<compile_context>
chip_gen: v5e
topology: v5e:2x2
jax: 0.10.0
libtpu: 0.0.40
codegen_flags: <defaults>
</compile_context>

<pallas_src>
import functools

import jax
import jax.numpy as jnp
from jax.experimental import pallas as pl
from jax.experimental.pallas import tpu as pltpu


# ----------------------------------------------------------------------------
# VMEM sizing helpers
# ----------------------------------------------------------------------------

def _round_up(x, m):
    return ((x + m - 1) // m) * m


def _sublane_rows(dtype):
    # rows per packed sublane tile: f32 -> 8, bf16/fp16 -> 16, int8/fp8 -> 32
    return {4: 8, 2: 16, 1: 32}.get(jnp.dtype(dtype).itemsize, 8)


def _vmem_capacity_bytes():
    try:
        info = pltpu.get_tpu_info()
        cap = getattr(info, "vmem_capacity_bytes", None)
        if cap:
            return int(cap)
    except Exception:
        pass
    return 64 << 20  # conservative fallback (v7x per-TensorCore VMEM)


def _pick_vmem_limit():
    cap = _vmem_capacity_bytes()
    # Above the default scoped limit (16/32 MiB), well under physical VMEM
    # (v7x: 64 MiB -> 48 MiB; v5e/v6e: 128 MiB -> 96 MiB).
    return int(max(32 << 20, min((cap * 3) // 4, 96 << 20)))


def _pick_class_block(n_cls, per_class_row_groups, ctx_dim, dtype, budget_bytes,
                      double_buffered, min_steps=8, min_block=64):
    """How many classes per grid step, from a per-chip VMEM budget.

    per_class_row_groups: row counts of each separately-tiled per-class array
    (each padded to the sublane multiple, lanes padded to 128).
    """
    sub = _sublane_rows(dtype)
    itemsize = jnp.dtype(dtype).itemsize
    lanes = _round_up(ctx_dim, 128)
    per_class = sum(_round_up(r, sub) for r in per_class_row_groups) * lanes * itemsize
    bufs = 2 if double_buffered else 1
    c = max(1, int(budget_bytes // (bufs * per_class)))
    # Keep enough grid steps for megacore sharding + pipeline fill/drain,
    # but never force a tiny tile.
    cap = max(-(-n_cls // min_steps), min_block)
    return int(max(1, min(c, n_cls, cap)))


# ----------------------------------------------------------------------------
# Kernel 1: one-time prompt buffer build (full concat, direct sub-slice stores)
# ----------------------------------------------------------------------------

def _prompt_build_kernel(prefix_ref, ctx_ref, suffix_ref, out_ref):
    # prefix_ref: (C_BLK, 1, D)      per-class SOS rows for this block
    # ctx_ref:    (n_ctx, D)         shared generic context (same block each step)
    # suffix_ref: (C_BLK, n_suf, D)  per-class suffix rows for this block
    # out_ref:    (C_BLK, L, D)      L = 1 + n_ctx + n_suf
    c_blk, _, d = out_ref.shape
    n_ctx = ctx_ref.shape[0]
    dt = out_ref.dtype

    # Three direct sub-slice stores: no in-register concatenate, so no hidden
    # (C_BLK, L, D) VMEM temporary and predictable per-step VMEM.
    out_ref[:, 0:1, :] = prefix_ref[...].astype(dt)
    out_ref[:, 1:1 + n_ctx, :] = jnp.broadcast_to(
        ctx_ref[...].astype(dt)[None, :, :], (c_blk, n_ctx, d))
    out_ref[:, 1 + n_ctx:, :] = suffix_ref[...].astype(dt)


def prompt_learner_build_prompts(ctx, token_prefix, token_suffix, *, class_block=None):
    """Full PromptLearner.forward() ('end' branch): builds the prompts buffer.

    Intended as a one-time (or rare) call; steady-state generation should use
    prompt_learner_forward() on the returned buffer.
    """
    n_ctx, ctx_dim = ctx.shape
    n_cls = token_prefix.shape[0]
    n_suf = token_suffix.shape[1]
    total_len = 1 + n_ctx + n_suf
    dtype = token_prefix.dtype

    vmem_limit = _pick_vmem_limit()
    if class_block is None:
        c_blk = _pick_class_block(
            n_cls, [1, n_suf, total_len], ctx_dim, dtype,
            budget_bytes=(vmem_limit * 2) // 3, double_buffered=True)
    else:
        c_blk = int(max(1, min(class_block, n_cls)))

    grid = (pl.cdiv(n_cls, c_blk),)

    grid_spec = pltpu.PrefetchScalarGridSpec(
        num_scalar_prefetch=0,
        grid=grid,
        in_specs=[
            pl.BlockSpec((c_blk, 1, ctx_dim), lambda i: (i, 0, 0)),       # prefix
            pl.BlockSpec((n_ctx, ctx_dim), lambda i: (0, 0)),             # shared ctx
            pl.BlockSpec((c_blk, n_suf, ctx_dim), lambda i: (i, 0, 0)),   # suffix
        ],
        out_specs=pl.BlockSpec((c_blk, total_len, ctx_dim), lambda i: (i, 0, 0)),
    )

    return pl.pallas_call(
        _prompt_build_kernel,
        out_shape=jax.ShapeDtypeStruct((n_cls, total_len, ctx_dim), dtype),
        grid_spec=grid_spec,
        compiler_params=pltpu.CompilerParams(
            dimension_semantics=("parallel",),   # independent class blocks
            vmem_limit_bytes=vmem_limit,
        ),
    )(token_prefix, ctx, token_suffix)


# ----------------------------------------------------------------------------
# Kernel 2: steady-state forward — write ONLY the ctx rows into the aliased
# persistent prompts buffer (prefix/suffix never move).
# ----------------------------------------------------------------------------

def _ctx_scatter_kernel(ctx_ref, base_ref, out_ref, ctx_tile, sem):
    # ctx_ref:  (n_ctx, D) VMEM      shared generic context
    # base_ref: full prompts in HBM (ANY) — aliased with out_ref, left in place
    # out_ref:  full prompts in HBM (ANY) — only rows [1:1+n_ctx] are rewritten
    # ctx_tile: (C_BLK, n_ctx, D) VMEM scratch
    # sem:      DMA semaphore
    del base_ref  # same HBM buffer as out_ref; prefix/suffix stay untouched
    c_blk, n_ctx, _ = ctx_tile.shape
    n_cls = out_ref.shape[0]
    i = pl.program_id(0)

    # Broadcast the shared ctx across this class block (VPU, VMEM-local).
    ctx_tile[...] = jnp.broadcast_to(
        ctx_ref[...].astype(ctx_tile.dtype)[None, :, :], ctx_tile.shape)

    # Clamp the last block so the DMA stays in bounds when c_blk does not
    # divide n_cls; overlapping rows rewrite identical data (benign).
    start = jnp.minimum(i * c_blk, n_cls - c_blk)

    cp = pltpu.make_async_copy(
        ctx_tile,
        out_ref.at[pl.ds(start, c_blk), pl.ds(1, n_ctx), :],
        sem,
    )
    cp.start()
    cp.wait()


@functools.partial(jax.jit, static_argnames=("class_block",), donate_argnums=(1,))
def prompt_learner_forward(ctx, prompts_base, class_block=None):
    """PromptLearner.forward() ('end' branch), steady-state path.

    prompts_base must already contain the correct prefix/suffix rows (e.g. the
    output of prompt_learner_build_prompts or of a previous forward). The
    buffer is donated / aliased; only rows [1:1+n_ctx] are rewritten with the
    current ctx. Returns the full prompts array.
    """
    n_ctx, ctx_dim = ctx.shape
    n_cls, total_len, _ = prompts_base.shape
    dtype = prompts_base.dtype

    vmem_limit = _pick_vmem_limit()
    if class_block is None:
        c_blk = _pick_class_block(
            n_cls, [n_ctx], ctx_dim, dtype,
            budget_bytes=vmem_limit // 2, double_buffered=False)
    else:
        c_blk = int(max(1, min(class_block, n_cls)))

    grid = (pl.cdiv(n_cls, c_blk),)

    grid_spec = pltpu.PrefetchScalarGridSpec(
        num_scalar_prefetch=0,
        grid=grid,
        in_specs=[
            pl.BlockSpec((n_ctx, ctx_dim), lambda i: (0, 0)),   # ctx -> VMEM
            pl.BlockSpec(memory_space=pl.ANY),                  # prompts (aliased, HBM)
        ],
        out_specs=pl.BlockSpec(memory_space=pl.ANY),            # prompts (aliased, HBM)
        scratch_shapes=[
            pltpu.VMEM((c_blk, n_ctx, ctx_dim), dtype),
            pltpu.SemaphoreType.DMA,
        ],
    )

    return pl.pallas_call(
        _ctx_scatter_kernel,
        out_shape=jax.ShapeDtypeStruct((n_cls, total_len, ctx_dim), dtype),
        grid_spec=grid_spec,
        input_output_aliases={1: 0},   # prompts_base -> output (no re-streaming)
        compiler_params=pltpu.CompilerParams(
            dimension_semantics=("parallel",),
            vmem_limit_bytes=vmem_limit,
        ),
    )(ctx, prompts_base)


# ----------------------------------------------------------------------------
# Demo / self-test
# ----------------------------------------------------------------------------

if __name__ == "__main__":
    # Small, CLIP-like shapes (real CLIP: ctx_dim=512, total_len=77).
    n_cls = 5        # number of classnames (deliberately not a power of two)
    n_ctx = 8        # number of learnable context tokens
    ctx_dim = 128    # text-transformer width
    total_len = 24   # tokenized prompt length
    n_suf = total_len - 1 - n_ctx

    key = jax.random.PRNGKey(0)
    k_ctx, k_pre, k_suf, k_ctx2 = jax.random.split(key, 4)

    # nn.init.normal_(ctx_vectors, std=0.02)
    ctx = (0.02 * jax.random.normal(k_ctx, (n_ctx, ctx_dim))).astype(jnp.float32)
    # Deterministic stand-ins for clip_model.token_embedding(tokenized_prompts)
    token_prefix = jax.random.normal(k_pre, (n_cls, 1, ctx_dim), dtype=jnp.float32)
    token_suffix = jax.random.normal(k_suf, (n_cls, n_suf, ctx_dim), dtype=jnp.float32)

    def ref_prompts(c):
        return jnp.concatenate(
            [token_prefix,
             jnp.broadcast_to(c.astype(token_prefix.dtype)[None, :, :],
                              (n_cls, n_ctx, ctx_dim)),
             token_suffix],
            axis=1)

    # One-time base build (this alone is the module's forward output).
    base = prompt_learner_build_prompts(ctx, token_prefix, token_suffix)
    base = jax.block_until_ready(base)
    assert base.shape == (n_cls, total_len, ctx_dim), base.shape
    assert jnp.allclose(base, ref_prompts(ctx)), "build kernel mismatch"

    # Edge-block check: class block that does not divide n_cls.
    base_small = prompt_learner_build_prompts(ctx, token_prefix, token_suffix,
                                              class_block=2)
    assert jnp.allclose(base_small, ref_prompts(ctx)), "build edge-block mismatch"

    # Steady-state forward: ctx changed (e.g. an optimizer step); only the ctx
    # rows are rewritten inside the aliased persistent prompts buffer.
    ctx2 = ctx + 0.01 * jax.random.normal(k_ctx2, ctx.shape).astype(jnp.float32)
    prompts = prompt_learner_forward(ctx2, base)          # donates `base`
    prompts = jax.block_until_ready(prompts)
    assert prompts.shape == (n_cls, total_len, ctx_dim), prompts.shape
    assert jnp.allclose(prompts, ref_prompts(ctx2)), "forward mismatch"

    # Reuse the returned buffer as the next call's base (steady-state loop),
    # with a class block that does not divide n_cls (exercises the clamp).
    prompts2 = prompt_learner_forward(ctx, prompts, class_block=2)
    prompts2 = jax.block_until_ready(prompts2)
    assert jnp.allclose(prompts2, ref_prompts(ctx)), "forward (reuse) mismatch"

    print("KERNEL_OK")
</pallas_src>

<mosaic_0001>
module attributes {stable_mosaic.version = 11 : i64} {
  func.func @_prompt_build_kernel(%arg0: i32, %arg1: memref<5x1x128xf32, #tpu.memory_space<vmem>>, %arg2: memref<8x128xf32, #tpu.memory_space<vmem>>, %arg3: memref<5x15x128xf32, #tpu.memory_space<vmem>>, %arg4: memref<5x24x128xf32, #tpu.memory_space<vmem>>) attributes {dimension_semantics = [#tpu.dimension_semantics<parallel>], iteration_bounds = array<i64: 1>, scalar_prefetch = 0 : i64, scratch_operands = 0 : i64, tpu.core_type = #tpu.core_type<tc>, window_params = [{transform_indices = @transform_0, window_bounds = array<i64: 5, 1, 128>}, {pipeline_mode = #tpu.pipeline_mode<synchronous>, transform_indices = @transform_1, window_bounds = array<i64: 8, 128>}, {transform_indices = @transform_2, window_bounds = array<i64: 5, 15, 128>}, {transform_indices = @transform_3, window_bounds = array<i64: 5, 24, 128>}]} {
    %c0 = arith.constant 0 : index
    %c0_0 = arith.constant 0 : index
    %c0_1 = arith.constant 0 : index
    %0 = vector.load %arg1[%c0, %c0_0, %c0_1] : memref<5x1x128xf32, #tpu.memory_space<vmem>>, vector<5x1x128xf32>
    %c0_2 = arith.constant 0 : index
    %c0_3 = arith.constant 0 : index
    %c0_4 = arith.constant 0 : index
    %1 = vector.load %arg4[%c0_2, %c0_3, %c0_4] : memref<5x24x128xf32, #tpu.memory_space<vmem>>, vector<5x1x128xf32>
    tpu.vector_store %arg4[%c0_2, %c0_3, %c0_4], %0 {strides = array<i32>} : memref<5x24x128xf32, #tpu.memory_space<vmem>>, vector<5x1x128xf32>,
    %c0_5 = arith.constant 0 : index
    %c0_6 = arith.constant 0 : index
    %2 = vector.load %arg2[%c0_5, %c0_6] : memref<8x128xf32, #tpu.memory_space<vmem>>, vector<8x128xf32>
    %3 = vector.shape_cast %2 : vector<8x128xf32> to vector<1x8x128xf32>
    %4 = vector.shape_cast %3 : vector<1x8x128xf32> to vector<1x8x128xf32>
    %5 = vector.broadcast %4 : vector<1x8x128xf32> to vector<5x8x128xf32>
    %c0_7 = arith.constant 0 : index
    %c1 = arith.constant 1 : index
    %c0_8 = arith.constant 0 : index
    %6 = vector.load %arg4[%c0_7, %c1, %c0_8] : memref<5x24x128xf32, #tpu.memory_space<vmem>>, vector<5x8x128xf32>
    tpu.vector_store %arg4[%c0_7, %c1, %c0_8], %5 {strides = array<i32>} : memref<5x24x128xf32, #tpu.memory_space<vmem>>, vector<5x8x128xf32>,
    %c0_9 = arith.constant 0 : index
    %c0_10 = arith.constant 0 : index
    %c0_11 = arith.constant 0 : index
    %7 = vector.load %arg3[%c0_9, %c0_10, %c0_11] : memref<5x15x128xf32, #tpu.memory_space<vmem>>, vector<5x15x128xf32>
    %c0_12 = arith.constant 0 : index
    %c9 = arith.constant 9 : index
    %c0_13 = arith.constant 0 : index
    %8 = vector.load %arg4[%c0_12, %c9, %c0_13] : memref<5x24x128xf32, #tpu.memory_space<vmem>>, vector<5x15x128xf32>
    tpu.vector_store %arg4[%c0_12, %c9, %c0_13], %7 {strides = array<i32>} : memref<5x24x128xf32, #tpu.memory_space<vmem>>, vector<5x15x128xf32>,
    return
  }
  func.func @transform_0(%arg0: i32) -> (i32, i32, i32) {
    %c0_i32 = arith.constant 0 : i32
    %c0_i32_0 = arith.constant 0 : i32
    %c0_i32_1 = arith.constant 0 : i32
    return %arg0, %c0_i32, %c0_i32_0 : i32, i32, i32
  }
  func.func @transform_1(%arg0: i32) -> (i32, i32) {
    %c0_i32 = arith.constant 0 : i32
    %c0_i32_0 = arith.constant 0 : i32
    %c0_i32_1 = arith.constant 0 : i32
    return %c0_i32, %c0_i32_0 : i32, i32
  }
  func.func @transform_2(%arg0: i32) -> (i32, i32, i32) {
    %c0_i32 = arith.constant 0 : i32
    %c0_i32_0 = arith.constant 0 : i32
    %c0_i32_1 = arith.constant 0 : i32
    return %arg0, %c0_i32, %c0_i32_0 : i32, i32, i32
  }
  func.func @transform_3(%arg0: i32) -> (i32, i32, i32) {
    %c0_i32 = arith.constant 0 : i32
    %c0_i32_0 = arith.constant 0 : i32
    %c0_i32_1 = arith.constant 0 : i32
    return %arg0, %c0_i32, %c0_i32_0 : i32, i32, i32
  }
}

</mosaic_0001>

<llo_original>
// kernel: tpu_custom_call.1
$region0: #{tpu_custom_call.1}
  #allocation0 [shape = 'u32[]', space=smem, size = 0x4, offset = 0x4, fixed_abs, tag = 'smem constant byte address 0x4 - core index']
  #allocation1 [shape = 'u32[72,128]{1,0:T(1,128)}', space=vmem, size = 0x9000, scoped, tag = 'internal scratch']
  %s0 = inlined_call_operand.hbm [shape: f32[5,1,128], index: 0, kind: input, shape index: {}]
  %s1 = inlined_call_operand.hbm [shape: f32[8,128], index: 1, kind: input, shape index: {}]
  %s2 = inlined_call_operand.hbm [shape: f32[5,15,128], index: 2, kind: input, shape index: {}]
  %s3 = inlined_call_operand.hbm [shape: f32[5,24,128], index: 3, kind: output, shape index: {}]
  %s4 = sld [smem:[#allocation0]]
  $region34: #{tpu_custom_call.1} parent=0
    _
  %s6 = ssub.s32 1, %s4
  %s7 = scalar_select 0, %s6, %s4
  $region1: #{tpu_custom_call.1} parent=0
    #allocation2 [shape = 'u8[2560]{0}', space=vmem, size = 0xc00, scoped, tag = 'input window, operand 0, single buffered']
    #allocation3 [shape = 's32[1]{0}', space=sflag, size = 0x4, scoped, tag = 'scoped memory for tpu_custom_call.1']
    #allocation4 [shape = 's32[1]{0}', space=sflag, size = 0x4, scoped, tag = 'scoped memory for tpu_custom_call.1']
    #allocation5 [shape = 'u8[4096]{0}', space=vmem, size = 0x1000, scoped, tag = 'input window, operand 1, single buffered']
    #allocation6 [shape = 's32[1]{0}', space=sflag, size = 0x4, scoped, tag = 'scoped memory for tpu_custom_call.1']
    #allocation7 [shape = 'u8[40960]{0}', space=vmem, size = 0xa000, scoped, tag = 'input window, operand 2, single buffered']
    #allocation8 [shape = 'u8[61440]{0}', space=vmem, size = 0xf000, scoped, tag = 'output window, operand 0, single buffered']
    %8 = vsyncpa [#allocation3], 0
    %9 = vsyncpa [#allocation6], 0
    %10 = vsyncpa [#allocation4], 0
    // Predicated region
    $region2: #{tpu_custom_call.1} parent=1 // pred_check
      _
    $region3: #{tpu_custom_call.1} parent=1 // pred_check_branch
      %12 = sbr.rel (0) target = $region5
    $region4: #{tpu_custom_call.1} parent=1 // pred_region
      %14 = vsyncadd [#allocation3], 0
      %s15 = sshll.u32 %s0, 4
      %s16 = int_to_ptr.hbm [resolvable:$true] %s15
      %s17 = sshll.u32 [#allocation2], 4
      %s18 = int_to_ptr.vmem [resolvable:$true] %s17
      %23 = dma.hbm_to_vmem [thread:$0]  %s16, 80, %s18, [#allocation3], 16, 16, 1
    $region5: #{tpu_custom_call.1} parent=1 // pred_fallthru
      _
    // Predicated region
    $region6: #{tpu_custom_call.1} parent=1 // pred_check
      _
    $region7: #{tpu_custom_call.1} parent=1 // pred_check_branch
      %25 = sbr.rel (0) target = $region9
    $region8: #{tpu_custom_call.1} parent=1 // pred_region
      %27 = vsyncadd [#allocation6], 0
      %s29 = sshll.u32 %s1, 4
      %s30 = int_to_ptr.hbm [resolvable:$true] %s29
      %s31 = sshll.u32 [#allocation5], 4
      %s32 = int_to_ptr.vmem [resolvable:$true] %s31
      %34 = dma.hbm_to_vmem [thread:$0]  %s30, 128, %s32, [#allocation6]
    $region9: #{tpu_custom_call.1} parent=1 // pred_fallthru
      _
    // Predicated region
    $region10: #{tpu_custom_call.1} parent=1 // pred_check
      _
    $region11: #{tpu_custom_call.1} parent=1 // pred_check_branch
      %36 = sbr.rel (0) target = $region13
    $region12: #{tpu_custom_call.1} parent=1 // pred_region
      %38 = vsyncadd [#allocation6], 0
      %s39 = sshll.u32 %s2, 4
      %s40 = int_to_ptr.hbm [resolvable:$true] %s39
      %s41 = sshll.u32 [#allocation7], 4
      %s42 = int_to_ptr.vmem [resolvable:$true] %s41
      %47 = dma.hbm_to_vmem [thread:$0]  %s40, 1280, %s42, [#allocation6], 128, 128, 8
    $region13: #{tpu_custom_call.1} parent=1 // pred_fallthru
      _
    // Predicated region
    $region14: #{tpu_custom_call.1} parent=1 // pred_check
      _
    $region15: #{tpu_custom_call.1} parent=1 // pred_check_branch
      %49 = sbr.rel (0) target = $region17
    $region16: #{tpu_custom_call.1} parent=1 // pred_region
      %51 = dma.done [#allocation3], 80
    $region17: #{tpu_custom_call.1} parent=1 // pred_fallthru
      _
    // Predicated region
    $region18: #{tpu_custom_call.1} parent=1 // pred_check
      _
    $region19: #{tpu_custom_call.1} parent=1 // pred_check_branch
      %53 = sbr.rel (0) target = $region21
    $region20: #{tpu_custom_call.1} parent=1 // pred_region
      %55 = dma.done [#allocation6], 128
    $region21: #{tpu_custom_call.1} parent=1 // pred_fallthru
      _
    // Predicated region
    $region22: #{tpu_custom_call.1} parent=1 // pred_check
      _
    $region23: #{tpu_custom_call.1} parent=1 // pred_check_branch
      %57 = sbr.rel (0) target = $region25
    $region24: #{tpu_custom_call.1} parent=1 // pred_region
      %59 = dma.done [#allocation6], 1280
    $region25: #{tpu_custom_call.1} parent=1 // pred_fallthru
      _
    %v60 = vld [vmem:[#allocation2] sm:$0x1]
    %v61 = vld [vmem:[#allocation2 + $0x1] sm:$0x1]
    %v62 = vld [vmem:[#allocation2 + $0x2] sm:$0x1]
    %v63 = vld [vmem:[#allocation2 + $0x3] sm:$0x1]
    %v64 = vld [vmem:[#allocation2 + $0x4] sm:$0x1]
    %65 = vst [vmem:[#allocation8] sm:$0x1] %v60
    %66 = vst [vmem:[#allocation8 + $0x18] sm:$0x1] %v61
    %67 = vst [vmem:[#allocation8 + $0x30] sm:$0x1] %v62
    %68 = vst [vmem:[#allocation8 + $0x48] sm:$0x1] %v63
    %69 = vst [vmem:[#allocation8 + $0x60] sm:$0x1] %v64
    %v70 = vld [vmem:[#allocation5] sm:$0xff]
    %71 = vst [vmem:[#allocation8 + $0x1] sm:$0xff] %v70
    %72 = vst [vmem:[#allocation8 + $0x19] sm:$0xff] %v70
    %73 = vst [vmem:[#allocation8 + $0x31] sm:$0xff] %v70
    %74 = vst [vmem:[#allocation8 + $0x49] sm:$0xff] %v70
    %75 = vst [vmem:[#allocation8 + $0x61] sm:$0xff] %v70
    %v76 = vld [vmem:[#allocation7] sm:$0xff]
    %v77 = vld [vmem:[#allocation7 + $0x8] sm:$0x7f]
    %v78 = vld [vmem:[#allocation7 + $0x10] sm:$0xff]
    %v79 = vld [vmem:[#allocation7 + $0x18] sm:$0x7f]
    %v80 = vld [vmem:[#allocation7 + $0x20] sm:$0xff]
    %v81 = vld [vmem:[#allocation7 + $0x28] sm:$0x7f]
    %v82 = vld [vmem:[#allocation7 + $0x30] sm:$0xff]
    %v83 = vld [vmem:[#allocation7 + $0x38] sm:$0x7f]
    %v84 = vld [vmem:[#allocation7 + $0x40] sm:$0xff]
    %v85 = vld [vmem:[#allocation7 + $0x48] sm:$0x7f]
    %86 = vst [vmem:[#allocation8 + $0x9] sm:$0xff] %v76
    %87 = vst [vmem:[#allocation8 + $0x11] sm:$0x7f] %v77
    %88 = vst [vmem:[#allocation8 + $0x21] sm:$0xff] %v78
    %89 = vst [vmem:[#allocation8 + $0x29] sm:$0x7f] %v79
    %90 = vst [vmem:[#allocation8 + $0x39] sm:$0xff] %v80
    %91 = vst [vmem:[#allocation8 + $0x41] sm:$0x7f] %v81
    %92 = vst [vmem:[#allocation8 + $0x51] sm:$0xff] %v82
    %93 = vst [vmem:[#allocation8 + $0x59] sm:$0x7f] %v83
    %94 = vst [vmem:[#allocation8 + $0x69] sm:$0xff] %v84
    %95 = vst [vmem:[#allocation8 + $0x71] sm:$0x7f] %v85
    // Predicated region
    $region26: #{tpu_custom_call.1} parent=1 // pred_check
      _
    $region27: #{tpu_custom_call.1} parent=1 // pred_check_branch
      %97 = sbr.rel (0) target = $region29
    $region28: #{tpu_custom_call.1} parent=1 // pred_region
      %99 = vsyncadd [#allocation4], 0
      %s100 = sshll.u32 [#allocation8], 4
      %s101 = int_to_ptr.vmem [resolvable:$true] %s100
      %s102 = sshll.u32 %s3, 4
      %s103 = int_to_ptr.hbm [resolvable:$true] %s102
      %108 = dma.vmem_to_hbm [thread:$0]  %s101, 1920, %s103, [#allocation4], 128, 128, 8
    $region29: #{tpu_custom_call.1} parent=1 // pred_fallthru
      _
    // Predicated region
    $region30: #{tpu_custom_call.1} parent=1 // pred_check
      _
    $region31: #{tpu_custom_call.1} parent=1 // pred_check_branch
      %110 = sbr.rel (0) target = $region33
    $region32: #{tpu_custom_call.1} parent=1 // pred_region
      %112 = dma.done [#allocation4], 1920
    $region33: #{tpu_custom_call.1} parent=1 // pred_fallthru
      _
    %113 = vsyncpa [#allocation3], 1
    %114 = vsyncpa [#allocation6], 1
    %115 = vsyncpa [#allocation4], 1

</llo_original>
